<compile_context>
chip_gen: v7x
topology: tpu7x:2x2x1
jax: 0.10.0
libtpu: 0.0.40
codegen_flags: <defaults>
</compile_context>

<pallas_src>
import jax
import jax.numpy as jnp
from jax import lax
from jax.experimental import pallas as pl
from jax.experimental.pallas import tpu as pltpu


def _e2lsh_kernel(vecs_ref, alpha_ref, out_ref):
    # vecs_ref : (TL, dim)        -- L-tile of vecs for head h
    # alpha_ref: (dim, n_hashes)  -- projection matrix for head h (resident across L-tiles)
    # out_ref  : (n_hashes, TL)   -- lane-dense output tile (L on lanes, n_hashes on sublanes)
    #
    # out[k, l] = sum_d alpha[d, k] * vecs[l, d]  ==  (vecs @ alpha)^T,
    # computed directly so no transpose is materialized in VMEM.
    out_ref[...] = lax.dot_general(
        alpha_ref[...],
        vecs_ref[...],
        dimension_numbers=(((0,), (1,)), ((), ())),
        preferred_element_type=jnp.float32,
    ).astype(out_ref.dtype)


def e2lsh_forward(vecs, alpha, *, tl=None, use_pallas=None):
    """E2LSH forward.

    vecs : (n_heads, L, dim)
    alpha: (n_heads, dim, n_hashes)
    returns (n_hashes, n_heads, L) == bmm(vecs, alpha).permute(2, 0, 1)

    (beta is not used in the PyTorch forward, so it is not an argument here.)
    """
    n_heads, L, dim = vecs.shape
    a_heads, a_dim, n_hashes = alpha.shape
    assert a_heads == n_heads and a_dim == dim, (vecs.shape, alpha.shape)

    if use_pallas is None:
        # Tiny problems: per-grid-step (~0.35 us) + launch overhead dwarfs the FLOPs;
        # let XLA fuse einsum + transpose instead.
        use_pallas = (L * dim) >= (64 * 1024)
    if not use_pallas:
        return jnp.transpose(jnp.einsum("hld,hdk->hlk", vecs, alpha), (2, 0, 1))

    # --- L tile size: big enough to stream HBM efficiently, small enough for VMEM. ---
    if tl is None:
        tl = min(L, 1024)
    if tl != L:
        # Block-shape legality: if not the full L extent, TL must be a multiple of 128
        # (lane axis of the output tile; also covers the 8-sublane rule for the vecs tile).
        tl = max(128, (tl // 128) * 128)

    grid = (n_heads, pl.cdiv(L, tl))

    itemsize = jnp.dtype(vecs.dtype).itemsize
    flops = 2 * n_heads * L * dim * n_hashes
    bytes_accessed = itemsize * (vecs.size + alpha.size + n_heads * n_hashes * L)
    cost = pl.CostEstimate(
        flops=flops, transcendentals=0, bytes_accessed=bytes_accessed
    )

    # VMEM budget: double-buffered input + output tiles (lane-padded), with headroom.
    # Clamp to 48 MiB so it is safe even on v7x's 64 MiB physical VMEM.
    lane = 128
    vmem_need = 2 * itemsize * (
        tl * dim                      # vecs tile
        + dim * max(n_hashes, lane)   # alpha tile (padded to 128 lanes)
        + max(n_hashes, 8) * tl       # output tile
    )
    vmem_limit = int(min(max(4 * vmem_need, 16 << 20), 48 << 20))

    projection_t = pl.pallas_call(
        _e2lsh_kernel,
        out_shape=jax.ShapeDtypeStruct((n_heads, n_hashes, L), vecs.dtype),
        grid_spec=pltpu.PrefetchScalarGridSpec(
            num_scalar_prefetch=0,
            grid=grid,
            in_specs=[
                # (TL, dim) L-tile of vecs for head h (leading head dim squeezed away).
                pl.BlockSpec((pl.Squeezed(), tl, dim), lambda h, l: (h, l, 0)),
                # Full (dim, n_hashes) projection for head h; same block across L-tiles.
                pl.BlockSpec((pl.Squeezed(), dim, n_hashes), lambda h, l: (h, 0, 0)),
            ],
            # Lane-dense output tile: n_hashes on sublanes, TL (>=128) on lanes.
            out_specs=pl.BlockSpec((pl.Squeezed(), n_hashes, tl), lambda h, l: (h, 0, l)),
        ),
        compiler_params=pltpu.CompilerParams(
            dimension_semantics=("parallel", "parallel"),
            vmem_limit_bytes=vmem_limit,
        ),
        cost_estimate=cost,
    )(vecs, alpha)

    # (n_heads, n_hashes, L) -> (n_hashes, n_heads, L): only swaps the two leading axes
    # (no lane/sublane data movement), unlike the original permute(2, 0, 1).
    return jnp.transpose(projection_t, (1, 0, 2))


if __name__ == "__main__":
    # Shapes consistent with the module: (n_heads, L, dim) x (n_heads, dim, n_hashes).
    # Large enough L that the Pallas path (two L-tiles per head) is exercised.
    n_hashes = 8
    n_heads = 4
    dim = 64
    L = 2048
    r = 1.0

    key = jax.random.PRNGKey(0)
    k_alpha, k_beta, k_vecs = jax.random.split(key, 3)

    # Deterministic "parameters" (mirror torch.normal / uniform init shapes).
    alpha = jax.random.normal(k_alpha, (n_heads, dim, n_hashes), dtype=jnp.float32)
    beta = r * jax.random.uniform(k_beta, (1, n_hashes), dtype=jnp.float32)  # unused in forward (matches PyTorch)
    vecs = jax.random.normal(k_vecs, (n_heads, L, dim), dtype=jnp.float32)

    # Pallas kernel path (forced so the kernel itself is exercised).
    out = e2lsh_forward(vecs, alpha, use_pallas=True)
    out = jax.block_until_ready(out)

    ref = jnp.transpose(jnp.einsum("hld,hdk->hlk", vecs, alpha), (2, 0, 1))
    assert out.shape == (n_hashes, n_heads, L), out.shape
    assert jnp.allclose(out, ref, atol=1e-4, rtol=1e-4)

    # Tiny-shape fallback path (goes straight to a fused XLA einsum).
    vecs_s = jax.random.normal(jax.random.PRNGKey(1), (n_heads, 8, 32), dtype=jnp.float32)
    alpha_s = jax.random.normal(jax.random.PRNGKey(2), (n_heads, 32, n_hashes), dtype=jnp.float32)
    out_s = jax.block_until_ready(e2lsh_forward(vecs_s, alpha_s))
    ref_s = jnp.transpose(jnp.einsum("hld,hdk->hlk", vecs_s, alpha_s), (2, 0, 1))
    assert out_s.shape == (n_hashes, n_heads, 8), out_s.shape
    assert jnp.allclose(out_s, ref_s, atol=1e-4, rtol=1e-4)

    print("KERNEL_OK")
</pallas_src>

<mosaic_0001>
module attributes {stable_mosaic.version = 11 : i64} {
  func.func @_e2lsh_kernel(%arg0: i32, %arg1: i32, %arg2: memref<1x1024x64xf32, #tpu.memory_space<vmem>>, %arg3: memref<1x64x8xf32, #tpu.memory_space<vmem>>, %arg4: memref<1x8x1024xf32, #tpu.memory_space<vmem>>) attributes {dimension_semantics = [#tpu.dimension_semantics<parallel>, #tpu.dimension_semantics<parallel>], iteration_bounds = array<i64: 4, 2>, scalar_prefetch = 0 : i64, scratch_operands = 0 : i64, tpu.core_type = #tpu.core_type<tc>, window_params = [{transform_indices = @transform_0, window_bounds = array<i64: 1, 1024, 64>}, {transform_indices = @transform_1, window_bounds = array<i64: 1, 64, 8>}, {transform_indices = @transform_2, window_bounds = array<i64: 1, 8, 1024>}]} {
    %c0 = arith.constant 0 : index
    %c0_0 = arith.constant 0 : index
    %c0_1 = arith.constant 0 : index
    %0 = vector.load %arg3[%c0, %c0_0, %c0_1] : memref<1x64x8xf32, #tpu.memory_space<vmem>>, vector<1x64x8xf32>
    %1 = vector.shape_cast %0 : vector<1x64x8xf32> to vector<64x8xf32>
    %c0_2 = arith.constant 0 : index
    %c0_3 = arith.constant 0 : index
    %c0_4 = arith.constant 0 : index
    %2 = vector.load %arg2[%c0_2, %c0_3, %c0_4] : memref<1x1024x64xf32, #tpu.memory_space<vmem>>, vector<1x1024x64xf32>
    %3 = vector.shape_cast %2 : vector<1x1024x64xf32> to vector<1024x64xf32>
    %cst = arith.constant dense<0.000000e+00> : vector<8x1024xf32>
    %4 = tpu.matmul %1, %3, %cst {dimension_numbers = #tpu.dot_dimension_numbers<[0], [1], [1], [0], [0, 1, 1, 0], [], []>} : vector<64x8xf32>, vector<1024x64xf32>, vector<8x1024xf32> -> vector<8x1024xf32>
    %c0_5 = arith.constant 0 : index
    %c0_6 = arith.constant 0 : index
    %c0_7 = arith.constant 0 : index
    %5 = vector.load %arg4[%c0_5, %c0_6, %c0_7] : memref<1x8x1024xf32, #tpu.memory_space<vmem>>, vector<1x8x1024xf32>
    %6 = vector.shape_cast %5 : vector<1x8x1024xf32> to vector<8x1024xf32>
    %7 = vector.shape_cast %4 : vector<8x1024xf32> to vector<1x8x1024xf32>
    tpu.vector_store %arg4[%c0_5, %c0_6, %c0_7], %7 {strides = array<i32>} : memref<1x8x1024xf32, #tpu.memory_space<vmem>>, vector<1x8x1024xf32>,
    return
  }
  func.func @transform_0(%arg0: i32, %arg1: i32) -> (i32, i32, i32) {
    %c0_i32 = arith.constant 0 : i32
    %c0_i32_0 = arith.constant 0 : i32
    return %arg0, %arg1, %c0_i32 : i32, i32, i32
  }
  func.func @transform_1(%arg0: i32, %arg1: i32) -> (i32, i32, i32) {
    %c0_i32 = arith.constant 0 : i32
    %c0_i32_0 = arith.constant 0 : i32
    %c0_i32_1 = arith.constant 0 : i32
    return %arg0, %c0_i32, %c0_i32_0 : i32, i32, i32
  }
  func.func @transform_2(%arg0: i32, %arg1: i32) -> (i32, i32, i32) {
    %c0_i32 = arith.constant 0 : i32
    %c0_i32_0 = arith.constant 0 : i32
    return %arg0, %c0_i32, %arg1 : i32, i32, i32
  }
}

</mosaic_0001>

<llo_original>
// kernel: tpu_custom_call.1
$region0: #{tpu_custom_call.1}
  #allocation0 [shape = 'u32[]', space=smem, size = 0x4, offset = 0x4, fixed_abs, tag = 'smem constant byte address 0x4 - core index']
  #allocation1 [shape = 'u32[144,128]{1,0:T(1,128)}', space=vmem, size = 0x12000, scoped, tag = 'internal scratch']
  %s0 = inlined_call_operand.vmem [shape: f32[4,2048,64], index: 0, kind: input, shape index: {}]
  %s1 = inlined_call_operand.vmem [shape: f32[4,64,8], index: 1, kind: input, shape index: {}]
  %s2 = inlined_call_operand.hbm [shape: f32[4,8,2048], index: 2, kind: output, shape index: {}]
  %s3 = sld [smem:[#allocation0]]
  $region41: #{tpu_custom_call.1} parent=0
    _
  %s5 = ssub.s32 1, %s3
  %s6 = scalar_select 0, %s5, %s3
  $region1: #{tpu_custom_call.1} parent=0
    #allocation2 [shape = 'u8[65536]{0}', space=vmem, size = 0x10000, scoped, tag = 'output window, operand 0']
    #allocation3 [shape = 's32[2]{0}', space=sflag, size = 0x8, scoped, tag = 'scoped memory for tpu_custom_call.1']
    %7 = vsyncpa [#allocation3], 0
    %s8 = scalar_lea.sflag [#allocation3], 1
    %9 = vsyncpa %s8, 0
    loop: start=0, step=1, limit=10
    $region2: #{tpu_custom_call.1} parent=1 // loop_pre_header
      _
    $region3: #{tpu_custom_call.1} parent=1 // loop_header
      %s11 = sphi 0, %s15
      %p12 = scmp.ge.s32.totalorder %s11, 10
      %s18 = sphi 0, %s30
      %s19 = sphi 0, %s26
      %s20 = sphi 0, %s18
      %s21 = sphi 0, %s19
      %s22 = sphi 0, %s20
      %s23 = sphi 0, %s21
      %s35 = sphi 0, %s37
      %s38 = sphi 0, %s35
      %s39 = sphi 0, %s38
      %s55 = sphi 0, %s39
      %s61 = sphi 0, %s63
      %s64 = sphi 0, %s61
      %s65 = sphi 0, %s64
      %s81 = sphi 0, %s65
      %s89 = sphi 0, %s91
      %s92 = sphi 0, %s89
      %s93 = sphi 0, %s92
      %s109 = sphi 0, %s93
    $region4: #{tpu_custom_call.1} parent=1 // loop_header_branch
      %14 = sbr.rel (%p12) target = $region8
    $region5: #{tpu_custom_call.1} parent=1 // loop_body
      %s16 = ssub.s32 %s11, 1
      %s17 = ssub.s32 %s11, 2
      %s24 = sadd.s32 1, %s19
      %p25 = scmp.ge.s32.totalorder %s24, 2
      %s26 = scalar_select %p25, 0, %s24
      %s27 = sadd.s32 1, %s18
      %s28 = scalar_select %p25, %s27, %s18
      %p29 = scmp.ge.s32.totalorder %s28, 4
      %s30 = scalar_select %p29, 0, %s28
      %s31 = ssub.s32 %s18, %s30
      %s32 = ssub.s32 %s19, %s26
      %s33 = sor.u32 %s31, %s32
      %p34 = scmp.eq.s32.totalorder %s33, 0
      %s36 = sadd.s32 %s35, 1
      %s37 = scalar_select %p34, %s35, %s36
      %p40 = pneg %p34
      %p41 = scmp.eq.s32.totalorder %s11, 7
      %p42 = por %p40, %p41
      %p43 = scmp.ne.s32.totalorder %s35, %s38
      %p44 = scmp.eq.s32.totalorder %s11, 0
      %p45 = por %p43, %p44
      %p46 = scmp.ne.s32.totalorder %s35, %s38
      %p47 = scmp.eq.s32.totalorder %s16, 7
      %p48 = por %p46, %p47
      %p49 = scmp.ne.s32.totalorder %s38, %s39
      %p50 = scmp.eq.s32.totalorder %s16, 0
      %p51 = por %p49, %p50
      %p52 = scmp.ne.s32.totalorder %s38, %s39
      %p53 = scmp.eq.s32.totalorder %s17, 7
      %p54 = por %p52, %p53
      %p56 = scmp.ne.s32.totalorder %s39, %s55
      %p57 = scmp.eq.s32.totalorder %s17, 0
      %p58 = por %p56, %p57
      %s59 = ssub.s32 %s18, %s30
      %p60 = scmp.eq.s32.totalorder %s59, 0
      %s62 = sadd.s32 %s61, 1
      %s63 = scalar_select %p60, %s61, %s62
      %p66 = pneg %p60
      %p67 = scmp.eq.s32.totalorder %s11, 7
      %p68 = por %p66, %p67
      %p69 = scmp.ne.s32.totalorder %s61, %s64
      %p70 = scmp.eq.s32.totalorder %s11, 0
      %p71 = por %p69, %p70
      %p72 = scmp.ne.s32.totalorder %s61, %s64
      %p73 = scmp.eq.s32.totalorder %s16, 7
      %p74 = por %p72, %p73
      %p75 = scmp.ne.s32.totalorder %s64, %s65
      %p76 = scmp.eq.s32.totalorder %s16, 0
      %p77 = por %p75, %p76
      %p78 = scmp.ne.s32.totalorder %s64, %s65
      %p79 = scmp.eq.s32.totalorder %s17, 7
      %p80 = por %p78, %p79
      %p82 = scmp.ne.s32.totalorder %s65, %s81
      %p83 = scmp.eq.s32.totalorder %s17, 0
      %p84 = por %p82, %p83
      %s85 = ssub.s32 %s18, %s30
      %s86 = ssub.s32 %s19, %s26
      %s87 = sor.u32 %s85, %s86
      %p88 = scmp.eq.s32.totalorder %s87, 0
      %s90 = sadd.s32 %s89, 1
      %s91 = scalar_select %p88, %s89, %s90
      %p94 = pneg %p88
      %p95 = scmp.eq.s32.totalorder %s11, 7
      %p96 = por %p94, %p95
      %p97 = scmp.ne.s32.totalorder %s89, %s92
      %p98 = scmp.eq.s32.totalorder %s11, 0
      %p99 = por %p97, %p98
      %p100 = scmp.ne.s32.totalorder %s89, %s92
      %p101 = scmp.eq.s32.totalorder %s16, 7
      %p102 = por %p100, %p101
      %p103 = scmp.ne.s32.totalorder %s92, %s93
      %p104 = scmp.eq.s32.totalorder %s16, 0
      %p105 = por %p103, %p104
      %p106 = scmp.ne.s32.totalorder %s92, %s93
      %p107 = scmp.eq.s32.totalorder %s17, 7
      %p108 = por %p106, %p107
      %p110 = scmp.ne.s32.totalorder %s93, %s109
      %p111 = scmp.eq.s32.totalorder %s17, 0
      %p112 = por %p110, %p111
      %p113 = scmp.le.s32.totalorder 1, %s11
      %p114 = scmp.lt.s32.totalorder %s11, 9
      %p115 = pnand %p113, %p114
      %p116 = pneg %p115
      // Predicated region
      $region9: #{tpu_custom_call.1} parent=5 // pred_check
        _
      $region10: #{tpu_custom_call.1} parent=5 // pred_check_branch
        %118 = sbr.rel (%p115) target = $region12
      $region11: #{tpu_custom_call.1} parent=5 // pred_region
        %s119 = ssub.s32 %s11, 1
      $region12: #{tpu_custom_call.1} parent=5 // pred_fallthru
        _
      %p120 = scmp.lt.s32.totalorder %s11, 8
      // Predicated region
      $region13: #{tpu_custom_call.1} parent=5 // pred_check
        %p121 = pneg %p120
      $region14: #{tpu_custom_call.1} parent=5 // pred_check_branch
        %123 = sbr.rel (%p121) target = $region16
      $region15: #{tpu_custom_call.1} parent=5 // pred_region
        // Predicated region
        $region17: #{tpu_custom_call.1} parent=15 // pred_check
          %p124 = pneg %p45
        $region18: #{tpu_custom_call.1} parent=15 // pred_check_branch
          %126 = sbr.rel (%p124) target = $region20
        $region19: #{tpu_custom_call.1} parent=15 // pred_region
          %s127 = smul.u32 128, %s19
          %p128 = scmp.lt.s32.totalorder %s18, 3
          %s129 = scalar_select %p128, %s18, 3
          %p130 = scmp.lt.s32.totalorder %s127, 255
          %s131 = scalar_select %p130, %s127, 255
          %s132 = smul.addr %s129, 256
          %s133 = sadd.s32 %s131, %s132
          %s134 = smul.addr %s133, 8
          %s135 = scalar_lea.vmem %s0, %s134
          %s136 = smul.u32 128, %s19
        $region20: #{tpu_custom_call.1} parent=15 // pred_fallthru
          _
        // Predicated region
        $region21: #{tpu_custom_call.1} parent=15 // pred_check
          %p137 = pneg %p71
        $region22: #{tpu_custom_call.1} parent=15 // pred_check_branch
          %139 = sbr.rel (%p137) target = $region24
        $region23: #{tpu_custom_call.1} parent=15 // pred_region
          %p140 = scmp.lt.s32.totalorder %s18, 3
          %s141 = scalar_select %p140, %s18, 3
          %s142 = smul.addr %s141, 8
          %s143 = smul.addr %s142, 8
          %s144 = scalar_lea.vmem %s1, %s143
        $region24: #{tpu_custom_call.1} parent=15 // pred_fallthru
          _
      $region16: #{tpu_custom_call.1} parent=5 // pred_fallthru
        _
      %p145 = scmp.le.s32.totalorder 1, %s11
      %p146 = scmp.lt.s32.totalorder %s11, 9
      %p147 = pnand %p145, %p146
      %p148 = pneg %p147
      // Predicated region
      $region25: #{tpu_custom_call.1} parent=5 // pred_check
        _
      $region26: #{tpu_custom_call.1} parent=5 // pred_check_branch
        %150 = sbr.rel (%p147) target = $region28
      $region27: #{tpu_custom_call.1} parent=5 // pred_region
        %s151 = ssub.s32 %s11, 1
        %s152 = smul.u32 128, %s21
        %p153 = scmp.lt.s32.totalorder %s20, 3
        %s154 = scalar_select %p153, %s20, 3
        %p155 = scmp.lt.s32.totalorder %s152, 255
        %s156 = scalar_select %p155, %s152, 255
        %s157 = smul.addr %s154, 256
        %s158 = sadd.s32 %s156, %s157
        %s159 = smul.addr %s158, 8
        %s160 = scalar_lea.vmem %s0, %s159
        %p161 = pneg %p51
        %p162 = pneg %p48
        %p163 = scmp.lt.s32.totalorder %s20, 3
        %s164 = scalar_select %p163, %s20, 3
        %s165 = smul.addr %s164, 8
        %s166 = smul.addr %s165, 8
        %s167 = scalar_lea.vmem %s1, %s166
        %p168 = pneg %p77
        %p169 = pneg %p74
        %p170 = pneg %p105
        %p171 = pneg %p102
        %s172 = sand.u32 %s92, 1
        %s173 = scalar_lea.sflag [#allocation3], %s172
        %s174 = sand.u32 %s92, 1
        %s175 = smul.addr %s174, 64
        %s176 = scalar_lea.vmem [#allocation2], %s175
        %s177 = smul.u32 128, %s21
        %p178 = scmp.lt.s32.totalorder %s20, 3
        %s179 = scalar_select %p178, %s20, 3
        %p180 = scmp.lt.s32.totalorder %s177, 255
        %s181 = scalar_select %p180, %s177, 255
        %s182 = smul.addr %s179, 256
        %s183 = sadd.s32 %s181, %s182
        %s184 = smul.addr %s183, 8
        %s185 = scalar_lea.vmem %s0, %s184
        %s186 = smul.u32 128, %s21
        %p187 = scmp.lt.s32.totalorder %s20, 3
        %s188 = scalar_select %p187, %s20, 3
        %s189 = smul.addr %s188, 8
        %s190 = smul.addr %s189, 8
        %s191 = scalar_lea.vmem %s1, %s190
        %s192 = smul.u32 8, %s21
        %v193 = vld [vmem:[%s191] sm:$0xff]
        %v194 = vld [vmem:[%s191 + $0x8] sm:$0xff]
        %v195 = vld [vmem:[%s191 + $0x10] sm:$0xff]
        %v196 = vld [vmem:[%s191 + $0x18] sm:$0xff]
        %v197 = vld [vmem:[%s191 + $0x20] sm:$0xff]
        %v198 = vld [vmem:[%s191 + $0x28] sm:$0xff]
        %v199 = vld [vmem:[%s191 + $0x30] sm:$0xff]
        %v200 = vld [vmem:[%s191 + $0x38] sm:$0xff]
        %v201 = vld [vmem:[%s185] sm:$0xff]
        %v202 = vld [vmem:[%s185 + $0x8] sm:$0xff]
        %v203 = vld [vmem:[%s185 + $0x10] sm:$0xff]
        %v204 = vld [vmem:[%s185 + $0x18] sm:$0xff]
        %v205 = vld [vmem:[%s185 + $0x20] sm:$0xff]
        %v206 = vld [vmem:[%s185 + $0x28] sm:$0xff]
        %v207 = vld [vmem:[%s185 + $0x30] sm:$0xff]
        %v208 = vld [vmem:[%s185 + $0x38] sm:$0xff]
        %v209 = vld [vmem:[%s185 + $0x40] sm:$0xff]
        %v210 = vld [vmem:[%s185 + $0x48] sm:$0xff]
        %v211 = vld [vmem:[%s185 + $0x50] sm:$0xff]
        %v212 = vld [vmem:[%s185 + $0x58] sm:$0xff]
        %v213 = vld [vmem:[%s185 + $0x60] sm:$0xff]
        %v214 = vld [vmem:[%s185 + $0x68] sm:$0xff]
        %v215 = vld [vmem:[%s185 + $0x70] sm:$0xff]
        %v216 = vld [vmem:[%s185 + $0x78] sm:$0xff]
        %v217 = vld [vmem:[%s185 + $0x80] sm:$0xff]
        %v218 = vld [vmem:[%s185 + $0x88] sm:$0xff]
        %v219 = vld [vmem:[%s185 + $0x90] sm:$0xff]
        %v220 = vld [vmem:[%s185 + $0x98] sm:$0xff]
        %v221 = vld [vmem:[%s185 + $0xa0] sm:$0xff]
        %v222 = vld [vmem:[%s185 + $0xa8] sm:$0xff]
        %v223 = vld [vmem:[%s185 + $0xb0] sm:$0xff]
        %v224 = vld [vmem:[%s185 + $0xb8] sm:$0xff]
        %v225 = vld [vmem:[%s185 + $0xc0] sm:$0xff]
        %v226 = vld [vmem:[%s185 + $0xc8] sm:$0xff]
        %v227 = vld [vmem:[%s185 + $0xd0] sm:$0xff]
        %v228 = vld [vmem:[%s185 + $0xd8] sm:$0xff]
        %v229 = vld [vmem:[%s185 + $0xe0] sm:$0xff]
        %v230 = vld [vmem:[%s185 + $0xe8] sm:$0xff]
        %v231 = vld [vmem:[%s185 + $0xf0] sm:$0xff]
        %v232 = vld [vmem:[%s185 + $0xf8] sm:$0xff]
        %v233 = vld [vmem:[%s185 + $0x100] sm:$0xff]
        %v234 = vld [vmem:[%s185 + $0x108] sm:$0xff]
        %v235 = vld [vmem:[%s185 + $0x110] sm:$0xff]
        %v236 = vld [vmem:[%s185 + $0x118] sm:$0xff]
        %v237 = vld [vmem:[%s185 + $0x120] sm:$0xff]
        %v238 = vld [vmem:[%s185 + $0x128] sm:$0xff]
        %v239 = vld [vmem:[%s185 + $0x130] sm:$0xff]
        %v240 = vld [vmem:[%s185 + $0x138] sm:$0xff]
        %v241 = vld [vmem:[%s185 + $0x140] sm:$0xff]
        %v242 = vld [vmem:[%s185 + $0x148] sm:$0xff]
        %v243 = vld [vmem:[%s185 + $0x150] sm:$0xff]
        %v244 = vld [vmem:[%s185 + $0x158] sm:$0xff]
        %v245 = vld [vmem:[%s185 + $0x160] sm:$0xff]
        %v246 = vld [vmem:[%s185 + $0x168] sm:$0xff]
        %v247 = vld [vmem:[%s185 + $0x170] sm:$0xff]
        %v248 = vld [vmem:[%s185 + $0x178] sm:$0xff]
        %v249 = vld [vmem:[%s185 + $0x180] sm:$0xff]
        %v250 = vld [vmem:[%s185 + $0x188] sm:$0xff]
        %v251 = vld [vmem:[%s185 + $0x190] sm:$0xff]
        %v252 = vld [vmem:[%s185 + $0x198] sm:$0xff]
        %v253 = vld [vmem:[%s185 + $0x1a0] sm:$0xff]
        %v254 = vld [vmem:[%s185 + $0x1a8] sm:$0xff]
        %v255 = vld [vmem:[%s185 + $0x1b0] sm:$0xff]
        %v256 = vld [vmem:[%s185 + $0x1b8] sm:$0xff]
        %v257 = vld [vmem:[%s185 + $0x1c0] sm:$0xff]
        %v258 = vld [vmem:[%s185 + $0x1c8] sm:$0xff]
        %v259 = vld [vmem:[%s185 + $0x1d0] sm:$0xff]
        %v260 = vld [vmem:[%s185 + $0x1d8] sm:$0xff]
        %v261 = vld [vmem:[%s185 + $0x1e0] sm:$0xff]
        %v262 = vld [vmem:[%s185 + $0x1e8] sm:$0xff]
        %v263 = vld [vmem:[%s185 + $0x1f0] sm:$0xff]
        %v264 = vld [vmem:[%s185 + $0x1f8] sm:$0xff]
        %v265 = vld [vmem:[%s185 + $0x200] sm:$0xff]
        %v266 = vld [vmem:[%s185 + $0x208] sm:$0xff]
        %v267 = vld [vmem:[%s185 + $0x210] sm:$0xff]
        %v268 = vld [vmem:[%s185 + $0x218] sm:$0xff]
        %v269 = vld [vmem:[%s185 + $0x220] sm:$0xff]
        %v270 = vld [vmem:[%s185 + $0x228] sm:$0xff]
        %v271 = vld [vmem:[%s185 + $0x230] sm:$0xff]
        %v272 = vld [vmem:[%s185 + $0x238] sm:$0xff]
        %v273 = vld [vmem:[%s185 + $0x240] sm:$0xff]
        %v274 = vld [vmem:[%s185 + $0x248] sm:$0xff]
        %v275 = vld [vmem:[%s185 + $0x250] sm:$0xff]
        %v276 = vld [vmem:[%s185 + $0x258] sm:$0xff]
        %v277 = vld [vmem:[%s185 + $0x260] sm:$0xff]
        %v278 = vld [vmem:[%s185 + $0x268] sm:$0xff]
        %v279 = vld [vmem:[%s185 + $0x270] sm:$0xff]
        %v280 = vld [vmem:[%s185 + $0x278] sm:$0xff]
        %v281 = vld [vmem:[%s185 + $0x280] sm:$0xff]
        %v282 = vld [vmem:[%s185 + $0x288] sm:$0xff]
        %v283 = vld [vmem:[%s185 + $0x290] sm:$0xff]
        %v284 = vld [vmem:[%s185 + $0x298] sm:$0xff]
        %v285 = vld [vmem:[%s185 + $0x2a0] sm:$0xff]
        %v286 = vld [vmem:[%s185 + $0x2a8] sm:$0xff]
        %v287 = vld [vmem:[%s185 + $0x2b0] sm:$0xff]
        %v288 = vld [vmem:[%s185 + $0x2b8] sm:$0xff]
        %v289 = vld [vmem:[%s185 + $0x2c0] sm:$0xff]
        %v290 = vld [vmem:[%s185 + $0x2c8] sm:$0xff]
        %v291 = vld [vmem:[%s185 + $0x2d0] sm:$0xff]
        %v292 = vld [vmem:[%s185 + $0x2d8] sm:$0xff]
        %v293 = vld [vmem:[%s185 + $0x2e0] sm:$0xff]
        %v294 = vld [vmem:[%s185 + $0x2e8] sm:$0xff]
        %v295 = vld [vmem:[%s185 + $0x2f0] sm:$0xff]
        %v296 = vld [vmem:[%s185 + $0x2f8] sm:$0xff]
        %v297 = vld [vmem:[%s185 + $0x300] sm:$0xff]
        %v298 = vld [vmem:[%s185 + $0x308] sm:$0xff]
        %v299 = vld [vmem:[%s185 + $0x310] sm:$0xff]
        %v300 = vld [vmem:[%s185 + $0x318] sm:$0xff]
        %v301 = vld [vmem:[%s185 + $0x320] sm:$0xff]
        %v302 = vld [vmem:[%s185 + $0x328] sm:$0xff]
        %v303 = vld [vmem:[%s185 + $0x330] sm:$0xff]
        %v304 = vld [vmem:[%s185 + $0x338] sm:$0xff]
        %v305 = vld [vmem:[%s185 + $0x340] sm:$0xff]
        %v306 = vld [vmem:[%s185 + $0x348] sm:$0xff]
        %v307 = vld [vmem:[%s185 + $0x350] sm:$0xff]
        %v308 = vld [vmem:[%s185 + $0x358] sm:$0xff]
        %v309 = vld [vmem:[%s185 + $0x360] sm:$0xff]
        %v310 = vld [vmem:[%s185 + $0x368] sm:$0xff]
        %v311 = vld [vmem:[%s185 + $0x370] sm:$0xff]
        %v312 = vld [vmem:[%s185 + $0x378] sm:$0xff]
        %v313 = vld [vmem:[%s185 + $0x380] sm:$0xff]
        %v314 = vld [vmem:[%s185 + $0x388] sm:$0xff]
        %v315 = vld [vmem:[%s185 + $0x390] sm:$0xff]
        %v316 = vld [vmem:[%s185 + $0x398] sm:$0xff]
        %v317 = vld [vmem:[%s185 + $0x3a0] sm:$0xff]
        %v318 = vld [vmem:[%s185 + $0x3a8] sm:$0xff]
        %v319 = vld [vmem:[%s185 + $0x3b0] sm:$0xff]
        %v320 = vld [vmem:[%s185 + $0x3b8] sm:$0xff]
        %v321 = vld [vmem:[%s185 + $0x3c0] sm:$0xff]
        %v322 = vld [vmem:[%s185 + $0x3c8] sm:$0xff]
        %v323 = vld [vmem:[%s185 + $0x3d0] sm:$0xff]
        %v324 = vld [vmem:[%s185 + $0x3d8] sm:$0xff]
        %v325 = vld [vmem:[%s185 + $0x3e0] sm:$0xff]
        %v326 = vld [vmem:[%s185 + $0x3e8] sm:$0xff]
        %v327 = vld [vmem:[%s185 + $0x3f0] sm:$0xff]
        %v328 = vld [vmem:[%s185 + $0x3f8] sm:$0xff]
        %329 = vxpose.xlu0.b32.start [1/16] %v193, 128
        %330 = vxpose.xlu0.b32.cont [2/16] %v194, 128
        %331 = vxpose.xlu0.b32.cont [3/16] %v195, 128
        %332 = vxpose.xlu0.b32.cont [4/16] %v196, 128
        %333 = vxpose.xlu0.b32.cont [5/16] %v197, 128
        %334 = vxpose.xlu0.b32.cont [6/16] %v198, 128
        %335 = vxpose.xlu0.b32.cont [7/16] %v199, 128
        %336 = vxpose.xlu0.b32.cont [8/16] %v200, 128
        %337 = vxpose.xlu0.b32.cont [9/16] 0.0, 128
        %338 = vxpose.xlu0.b32.cont [10/16] 0.0, 128
        %339 = vxpose.xlu0.b32.cont [11/16] 0.0, 128
        %340 = vxpose.xlu0.b32.cont [12/16] 0.0, 128
        %341 = vxpose.xlu0.b32.cont [13/16] 0.0, 128
        %342 = vxpose.xlu0.b32.cont [14/16] 0.0, 128
        %343 = vxpose.xlu0.b32.cont [15/16] 0.0, 128
        %344 = vxpose.xlu0.b32.end [16/16] 0.0, 128
        %v345 = vpop.trf.xlu0
        %v346 = vpop.trf.xlu0
        %v347 = vpop.trf.xlu0
        %v348 = vpop.trf.xlu0
        %v349 = vpop.trf.xlu0
        %v350 = vpop.trf.xlu0
        %v351 = vpop.trf.xlu0
        %v352 = vpop.trf.xlu0
        %v353 = vpop.trf.xlu0
        %v354 = vpop.trf.xlu0
        %v355 = vpop.trf.xlu0
        %v356 = vpop.trf.xlu0
        %v357 = vpop.trf.xlu0
        %v358 = vpop.trf.xlu0
        %v359 = vpop.trf.xlu0
        %v360 = vpop.trf.xlu0
        %vm361 = vcmask 523264
        %v363 = vsel %vm361, %v345, 0
        %v366 = vsel %vm361, %v201, 0
        %v369 = vsel %vm361, %v202, 0
        %v372 = vsel %vm361, %v203, 0
        %v375 = vsel %vm361, %v204, 0
        %v378 = vsel %vm361, %v205, 0
        %v381 = vsel %vm361, %v206, 0
        %v384 = vsel %vm361, %v207, 0
        %v387 = vsel %vm361, %v208, 0
        %v390 = vsel %vm361, %v209, 0
        %v393 = vsel %vm361, %v210, 0
        %v396 = vsel %vm361, %v211, 0
        %v399 = vsel %vm361, %v212, 0
        %v402 = vsel %vm361, %v213, 0
        %v405 = vsel %vm361, %v214, 0
        %v408 = vsel %vm361, %v215, 0
        %v411 = vsel %vm361, %v216, 0
        %v414 = vsel %vm361, %v217, 0
        %v417 = vsel %vm361, %v218, 0
        %v420 = vsel %vm361, %v219, 0
        %v423 = vsel %vm361, %v220, 0
        %v426 = vsel %vm361, %v221, 0
        %v429 = vsel %vm361, %v222, 0
        %v432 = vsel %vm361, %v223, 0
        %v435 = vsel %vm361, %v224, 0
        %v438 = vsel %vm361, %v225, 0
        %v441 = vsel %vm361, %v226, 0
        %v444 = vsel %vm361, %v227, 0
        %v447 = vsel %vm361, %v228, 0
        %v450 = vsel %vm361, %v229, 0
        %v453 = vsel %vm361, %v230, 0
        %v456 = vsel %vm361, %v231, 0
        %v459 = vsel %vm361, %v232, 0
        %v462 = vsel %vm361, %v233, 0
        %v465 = vsel %vm361, %v234, 0
        %v468 = vsel %vm361, %v235, 0
        %v471 = vsel %vm361, %v236, 0
        %v474 = vsel %vm361, %v237, 0
        %v477 = vsel %vm361, %v238, 0
        %v480 = vsel %vm361, %v239, 0
        %v483 = vsel %vm361, %v240, 0
        %v486 = vsel %vm361, %v241, 0
        %v489 = vsel %vm361, %v242, 0
        %v492 = vsel %vm361, %v243, 0
        %v495 = vsel %vm361, %v244, 0
        %v498 = vsel %vm361, %v245, 0
        %v501 = vsel %vm361, %v246, 0
        %v504 = vsel %vm361, %v247, 0
        %v507 = vsel %vm361, %v248, 0
        %v510 = vsel %vm361, %v249, 0
        %v513 = vsel %vm361, %v250, 0
        %v516 = vsel %vm361, %v251, 0
        %v519 = vsel %vm361, %v252, 0
        %v522 = vsel %vm361, %v253, 0
        %v525 = vsel %vm361, %v254, 0
        %v528 = vsel %vm361, %v255, 0
        %v531 = vsel %vm361, %v256, 0
        %v534 = vsel %vm361, %v257, 0
        %v537 = vsel %vm361, %v258, 0
        %v540 = vsel %vm361, %v259, 0
        %v543 = vsel %vm361, %v260, 0
        %v546 = vsel %vm361, %v261, 0
        %v549 = vsel %vm361, %v262, 0
        %v552 = vsel %vm361, %v263, 0
        %v555 = vsel %vm361, %v264, 0
        %v558 = vsel %vm361, %v265, 0
        %v561 = vsel %vm361, %v266, 0
        %v564 = vsel %vm361, %v267, 0
        %v567 = vsel %vm361, %v268, 0
        %v570 = vsel %vm361, %v269, 0
        %v573 = vsel %vm361, %v270, 0
        %v576 = vsel %vm361, %v271, 0
        %v579 = vsel %vm361, %v272, 0
        %v582 = vsel %vm361, %v273, 0
        %v585 = vsel %vm361, %v274, 0
        %v588 = vsel %vm361, %v275, 0
        %v591 = vsel %vm361, %v276, 0
        %v594 = vsel %vm361, %v277, 0
        %v597 = vsel %vm361, %v278, 0
        %v600 = vsel %vm361, %v279, 0
        %v603 = vsel %vm361, %v280, 0
        %v606 = vsel %vm361, %v281, 0
        %v609 = vsel %vm361, %v282, 0
        %v612 = vsel %vm361, %v283, 0
        %v615 = vsel %vm361, %v284, 0
        %v618 = vsel %vm361, %v285, 0
        %v621 = vsel %vm361, %v286, 0
        %v624 = vsel %vm361, %v287, 0
        %v627 = vsel %vm361, %v288, 0
        %v630 = vsel %vm361, %v289, 0
        %v633 = vsel %vm361, %v290, 0
        %v636 = vsel %vm361, %v291, 0
        %v639 = vsel %vm361, %v292, 0
        %v642 = vsel %vm361, %v293, 0
        %v645 = vsel %vm361, %v294, 0
        %v648 = vsel %vm361, %v295, 0
        %v651 = vsel %vm361, %v296, 0
        %v654 = vsel %vm361, %v297, 0
        %v657 = vsel %vm361, %v298, 0
        %v660 = vsel %vm361, %v299, 0
        %v663 = vsel %vm361, %v300, 0
        %v666 = vsel %vm361, %v301, 0
        %v669 = vsel %vm361, %v302, 0
        %v672 = vsel %vm361, %v303, 0
        %v675 = vsel %vm361, %v304, 0
        %v678 = vsel %vm361, %v305, 0
        %v681 = vsel %vm361, %v306, 0
        %v684 = vsel %vm361, %v307, 0
        %v687 = vsel %vm361, %v308, 0
        %v690 = vsel %vm361, %v309, 0
        %v693 = vsel %vm361, %v310, 0
        %v696 = vsel %vm361, %v311, 0
        %v699 = vsel %vm361, %v312, 0
        %v702 = vsel %vm361, %v313, 0
        %v705 = vsel %vm361, %v314, 0
        %v708 = vsel %vm361, %v315, 0
        %v711 = vsel %vm361, %v316, 0
        %v714 = vsel %vm361, %v317, 0
        %v717 = vsel %vm361, %v318, 0
        %v720 = vsel %vm361, %v319, 0
        %v723 = vsel %vm361, %v320, 0
        %v726 = vsel %vm361, %v321, 0
        %v729 = vsel %vm361, %v322, 0
        %v732 = vsel %vm361, %v323, 0
        %v735 = vsel %vm361, %v324, 0
        %v738 = vsel %vm361, %v325, 0
        %v741 = vsel %vm361, %v326, 0
        %v744 = vsel %vm361, %v327, 0
        %v747 = vsel %vm361, %v328, 0
        %749 = vmatprep.subr.mxu0 0.0
        %750 = vmatpush1.xpose.msra.mxu0 %v366
        %751 = vmatprep.subr.mxu0 0.0
        %752 = vmatpush1.xpose.msra.mxu0 %v369
        %753 = vmatprep.subr.mxu0 0.0
        %754 = vmatpush1.xpose.msra.mxu0 %v372
        %755 = vmatprep.subr.mxu0 0.0
        %756 = vmatpush1.xpose.msra.mxu0 %v375
        %757 = vmatprep.subr.mxu0 0.0
        %758 = vmatpush1.xpose.msra.mxu0 %v378
        %759 = vmatprep.subr.mxu0 0.0
        %760 = vmatpush1.xpose.msra.mxu0 %v381
        %761 = vmatprep.subr.mxu0 0.0
        %762 = vmatpush1.xpose.msra.mxu0 %v384
        %763 = vmatprep.subr.mxu0 0.0
        %764 = vmatpush1.xpose.msra.mxu0 %v387
        %765 = vmatprep.subr.mxu0 0.0
        %766 = vmatpush1.xpose.msra.mxu0 %v390
        %767 = vmatprep.subr.mxu0 0.0
        %768 = vmatpush1.xpose.msra.mxu0 %v393
        %769 = vmatprep.subr.mxu0 0.0
        %770 = vmatpush1.xpose.msra.mxu0 %v396
        %771 = vmatprep.subr.mxu0 0.0
        %772 = vmatpush1.xpose.msra.mxu0 %v399
        %773 = vmatprep.subr.mxu0 0.0
        %774 = vmatpush1.xpose.msra.mxu0 %v402
        %775 = vmatprep.subr.mxu0 0.0
        %776 = vmatpush1.xpose.msra.mxu0 %v405
        %777 = vmatprep.subr.mxu0 0.0
        %778 = vmatpush1.xpose.msra.mxu0 %v408
        %779 = vmatprep.subr.mxu0 0.0
        %780 = vmatpush1.xpose.msra.mxu0 %v411
        %781 = vmatprep.subr.mxu0 0.0
        %782 = vmatpush1.xpose.msra.mxu0 %v414
        %783 = vmatprep.subr.mxu0 0.0
        %784 = vmatpush1.xpose.msra.mxu0 %v417
        %785 = vmatprep.subr.mxu0 0.0
        %786 = vmatpush1.xpose.msra.mxu0 %v420
        %787 = vmatprep.subr.mxu0 0.0
        %788 = vmatpush1.xpose.msra.mxu0 %v423
        %789 = vmatprep.subr.mxu0 0.0
        %790 = vmatpush1.xpose.msra.mxu0 %v426
        %791 = vmatprep.subr.mxu0 0.0
        %792 = vmatpush1.xpose.msra.mxu0 %v429
        %793 = vmatprep.subr.mxu0 0.0
        %794 = vmatpush1.xpose.msra.mxu0 %v432
        %795 = vmatprep.subr.mxu0 0.0
        %796 = vmatpush1.xpose.msra.mxu0 %v435
        %797 = vmatprep.subr.mxu0 0.0
        %798 = vmatpush1.xpose.msra.mxu0 %v438
        %799 = vmatprep.subr.mxu0 0.0
        %800 = vmatpush1.xpose.msra.mxu0 %v441
        %801 = vmatprep.subr.mxu0 0.0
        %802 = vmatpush1.xpose.msra.mxu0 %v444
        %803 = vmatprep.subr.mxu0 0.0
        %804 = vmatpush1.xpose.msra.mxu0 %v447
        %805 = vmatprep.subr.mxu0 0.0
        %806 = vmatpush1.xpose.msra.mxu0 %v450
        %807 = vmatprep.subr.mxu0 0.0
        %808 = vmatpush1.xpose.msra.mxu0 %v453
        %809 = vmatprep.subr.mxu0 0.0
        %810 = vmatpush1.xpose.msra.mxu0 %v456
        %811 = vmatprep.subr.mxu0 0.0
        %812 = vmatpush1.xpose.msra.mxu0 %v459
        %813 = vmatprep.mubr.f32.mxu0 0.0
        %814 = vmatmul.mubr.f32.gmra.mrb[0].mxu0 %v363
        %v815 = vpop.f32.mrb[0].mxu0
        %v816 = vadd.f32 0.0, %v815
        %v817 = vpop.f32.mrb[0].mxu0
        %v818 = vadd.f32 0.0, %v817
        %819 = vdwg.mxu0
        %820 = vmatprep.subr.mxu0 0.0
        %821 = vmatpush1.xpose.msra.mxu0 %v462
        %822 = vmatprep.subr.mxu0 0.0
        %823 = vmatpush1.xpose.msra.mxu0 %v465
        %824 = vmatprep.subr.mxu0 0.0
        %825 = vmatpush1.xpose.msra.mxu0 %v468
        %826 = vmatprep.subr.mxu0 0.0
        %827 = vmatpush1.xpose.msra.mxu0 %v471
        %828 = vmatprep.subr.mxu0 0.0
        %829 = vmatpush1.xpose.msra.mxu0 %v474
        %830 = vmatprep.subr.mxu0 0.0
        %831 = vmatpush1.xpose.msra.mxu0 %v477
        %832 = vmatprep.subr.mxu0 0.0
        %833 = vmatpush1.xpose.msra.mxu0 %v480
        %834 = vmatprep.subr.mxu0 0.0
        %835 = vmatpush1.xpose.msra.mxu0 %v483
        %836 = vmatprep.subr.mxu0 0.0
        %837 = vmatpush1.xpose.msra.mxu0 %v486
        %838 = vmatprep.subr.mxu0 0.0
        %839 = vmatpush1.xpose.msra.mxu0 %v489
        %840 = vmatprep.subr.mxu0 0.0
        %841 = vmatpush1.xpose.msra.mxu0 %v492
        %842 = vmatprep.subr.mxu0 0.0
        %843 = vmatpush1.xpose.msra.mxu0 %v495
        %844 = vmatprep.subr.mxu0 0.0
        %845 = vmatpush1.xpose.msra.mxu0 %v498
        %846 = vmatprep.subr.mxu0 0.0
        %847 = vmatpush1.xpose.msra.mxu0 %v501
        %848 = vmatprep.subr.mxu0 0.0
        %849 = vmatpush1.xpose.msra.mxu0 %v504
        %850 = vmatprep.subr.mxu0 0.0
        %851 = vmatpush1.xpose.msra.mxu0 %v507
        %852 = vmatprep.subr.mxu0 0.0
        %853 = vmatpush1.xpose.msra.mxu0 %v510
        %854 = vmatprep.subr.mxu0 0.0
        %855 = vmatpush1.xpose.msra.mxu0 %v513
        %856 = vmatprep.subr.mxu0 0.0
        %857 = vmatpush1.xpose.msra.mxu0 %v516
        %858 = vmatprep.subr.mxu0 0.0
        %859 = vmatpush1.xpose.msra.mxu0 %v519
        %860 = vmatprep.subr.mxu0 0.0
        %861 = vmatpush1.xpose.msra.mxu0 %v522
        %862 = vmatprep.subr.mxu0 0.0
        %863 = vmatpush1.xpose.msra.mxu0 %v525
        %864 = vmatprep.subr.mxu0 0.0
        %865 = vmatpush1.xpose.msra.mxu0 %v528
        %866 = vmatprep.subr.mxu0 0.0
        %867 = vmatpush1.xpose.msra.mxu0 %v531
        %868 = vmatprep.subr.mxu0 0.0
        %869 = vmatpush1.xpose.msra.mxu0 %v534
        %870 = vmatprep.subr.mxu0 0.0
        %871 = vmatpush1.xpose.msra.mxu0 %v537
        %872 = vmatprep.subr.mxu0 0.0
        %873 = vmatpush1.xpose.msra.mxu0 %v540
        %874 = vmatprep.subr.mxu0 0.0
        %875 = vmatpush1.xpose.msra.mxu0 %v543
        %876 = vmatprep.subr.mxu0 0.0
        %877 = vmatpush1.xpose.msra.mxu0 %v546
        %878 = vmatprep.subr.mxu0 0.0
        %879 = vmatpush1.xpose.msra.mxu0 %v549
        %880 = vmatprep.subr.mxu0 0.0
        %881 = vmatpush1.xpose.msra.mxu0 %v552
        %882 = vmatprep.subr.mxu0 0.0
        %883 = vmatpush1.xpose.msra.mxu0 %v555
        %884 = vmatprep.mubr.f32.mxu0 0.0
        %885 = vmatmul.mubr.f32.gmra.mrb[0].mxu0 %v363
        %v886 = vpop.f32.mrb[0].mxu0
        %v887 = vadd.f32 0.0, %v886
        %v888 = vpop.f32.mrb[0].mxu0
        %v889 = vadd.f32 0.0, %v888
        %890 = vdwg.mxu0
        %891 = vmatprep.subr.mxu0 0.0
        %892 = vmatpush1.xpose.msra.mxu0 %v558
        %893 = vmatprep.subr.mxu0 0.0
        %894 = vmatpush1.xpose.msra.mxu0 %v561
        %895 = vmatprep.subr.mxu0 0.0
        %896 = vmatpush1.xpose.msra.mxu0 %v564
        %897 = vmatprep.subr.mxu0 0.0
        %898 = vmatpush1.xpose.msra.mxu0 %v567
        %899 = vmatprep.subr.mxu0 0.0
        %900 = vmatpush1.xpose.msra.mxu0 %v570
        %901 = vmatprep.subr.mxu0 0.0
        %902 = vmatpush1.xpose.msra.mxu0 %v573
        %903 = vmatprep.subr.mxu0 0.0
        %904 = vmatpush1.xpose.msra.mxu0 %v576
        %905 = vmatprep.subr.mxu0 0.0
        %906 = vmatpush1.xpose.msra.mxu0 %v579
        %907 = vmatprep.subr.mxu0 0.0
        %908 = vmatpush1.xpose.msra.mxu0 %v582
        %909 = vmatprep.subr.mxu0 0.0
        %910 = vmatpush1.xpose.msra.mxu0 %v585
        %911 = vmatprep.subr.mxu0 0.0
        %912 = vmatpush1.xpose.msra.mxu0 %v588
        %913 = vmatprep.subr.mxu0 0.0
        %914 = vmatpush1.xpose.msra.mxu0 %v591
        %915 = vmatprep.subr.mxu0 0.0
        %916 = vmatpush1.xpose.msra.mxu0 %v594
        %917 = vmatprep.subr.mxu0 0.0
        %918 = vmatpush1.xpose.msra.mxu0 %v597
        %919 = vmatprep.subr.mxu0 0.0
        %920 = vmatpush1.xpose.msra.mxu0 %v600
        %921 = vmatprep.subr.mxu0 0.0
        %922 = vmatpush1.xpose.msra.mxu0 %v603
        %923 = vmatprep.subr.mxu0 0.0
        %924 = vmatpush1.xpose.msra.mxu0 %v606
        %925 = vmatprep.subr.mxu0 0.0
        %926 = vmatpush1.xpose.msra.mxu0 %v609
        %927 = vmatprep.subr.mxu0 0.0
        %928 = vmatpush1.xpose.msra.mxu0 %v612
        %929 = vmatprep.subr.mxu0 0.0
        %930 = vmatpush1.xpose.msra.mxu0 %v615
        %931 = vmatprep.subr.mxu0 0.0
        %932 = vmatpush1.xpose.msra.mxu0 %v618
        %933 = vmatprep.subr.mxu0 0.0
        %934 = vmatpush1.xpose.msra.mxu0 %v621
        %935 = vmatprep.subr.mxu0 0.0
        %936 = vmatpush1.xpose.msra.mxu0 %v624
        %937 = vmatprep.subr.mxu0 0.0
        %938 = vmatpush1.xpose.msra.mxu0 %v627
        %939 = vmatprep.subr.mxu0 0.0
        %940 = vmatpush1.xpose.msra.mxu0 %v630
        %941 = vmatprep.subr.mxu0 0.0
        %942 = vmatpush1.xpose.msra.mxu0 %v633
        %943 = vmatprep.subr.mxu0 0.0
        %944 = vmatpush1.xpose.msra.mxu0 %v636
        %945 = vmatprep.subr.mxu0 0.0
        %946 = vmatpush1.xpose.msra.mxu0 %v639
        %947 = vmatprep.subr.mxu0 0.0
        %948 = vmatpush1.xpose.msra.mxu0 %v642
        %949 = vmatprep.subr.mxu0 0.0
        %950 = vmatpush1.xpose.msra.mxu0 %v645
        %951 = vmatprep.subr.mxu0 0.0
        %952 = vmatpush1.xpose.msra.mxu0 %v648
        %953 = vmatprep.subr.mxu0 0.0
        %954 = vmatpush1.xpose.msra.mxu0 %v651
        %955 = vmatprep.mubr.f32.mxu0 0.0
        %956 = vmatmul.mubr.f32.gmra.mrb[0].mxu0 %v363
        %v957 = vpop.f32.mrb[0].mxu0
        %v958 = vadd.f32 0.0, %v957
        %v959 = vpop.f32.mrb[0].mxu0
        %v960 = vadd.f32 0.0, %v959
        %961 = vdwg.mxu0
        %962 = vmatprep.subr.mxu0 0.0
        %963 = vmatpush1.xpose.msra.mxu0 %v654
        %964 = vmatprep.subr.mxu0 0.0
        %965 = vmatpush1.xpose.msra.mxu0 %v657
        %966 = vmatprep.subr.mxu0 0.0
        %967 = vmatpush1.xpose.msra.mxu0 %v660
        %968 = vmatprep.subr.mxu0 0.0
        %969 = vmatpush1.xpose.msra.mxu0 %v663
        %970 = vmatprep.subr.mxu0 0.0
        %971 = vmatpush1.xpose.msra.mxu0 %v666
        %972 = vmatprep.subr.mxu0 0.0
        %973 = vmatpush1.xpose.msra.mxu0 %v669
        %974 = vmatprep.subr.mxu0 0.0
        %975 = vmatpush1.xpose.msra.mxu0 %v672
        %976 = vmatprep.subr.mxu0 0.0
        %977 = vmatpush1.xpose.msra.mxu0 %v675
        %978 = vmatprep.subr.mxu0 0.0
        %979 = vmatpush1.xpose.msra.mxu0 %v678
        %980 = vmatprep.subr.mxu0 0.0
        %981 = vmatpush1.xpose.msra.mxu0 %v681
        %982 = vmatprep.subr.mxu0 0.0
        %983 = vmatpush1.xpose.msra.mxu0 %v684
        %984 = vmatprep.subr.mxu0 0.0
        %985 = vmatpush1.xpose.msra.mxu0 %v687
        %986 = vmatprep.subr.mxu0 0.0
        %987 = vmatpush1.xpose.msra.mxu0 %v690
        %988 = vmatprep.subr.mxu0 0.0
        %989 = vmatpush1.xpose.msra.mxu0 %v693
        %990 = vmatprep.subr.mxu0 0.0
        %991 = vmatpush1.xpose.msra.mxu0 %v696
        %992 = vmatprep.subr.mxu0 0.0
        %993 = vmatpush1.xpose.msra.mxu0 %v699
        %994 = vmatprep.subr.mxu0 0.0
        %995 = vmatpush1.xpose.msra.mxu0 %v702
        %996 = vmatprep.subr.mxu0 0.0
        %997 = vmatpush1.xpose.msra.mxu0 %v705
        %998 = vmatprep.subr.mxu0 0.0
        %999 = vmatpush1.xpose.msra.mxu0 %v708
        %1000 = vmatprep.subr.mxu0 0.0
        %1001 = vmatpush1.xpose.msra.mxu0 %v711
        %1002 = vmatprep.subr.mxu0 0.0
        %1003 = vmatpush1.xpose.msra.mxu0 %v714
        %1004 = vmatprep.subr.mxu0 0.0
        %1005 = vmatpush1.xpose.msra.mxu0 %v717
        %1006 = vmatprep.subr.mxu0 0.0
        %1007 = vmatpush1.xpose.msra.mxu0 %v720
        %1008 = vmatprep.subr.mxu0 0.0
        %1009 = vmatpush1.xpose.msra.mxu0 %v723
        %1010 = vmatprep.subr.mxu0 0.0
        %1011 = vmatpush1.xpose.msra.mxu0 %v726
        %1012 = vmatprep.subr.mxu0 0.0
        %1013 = vmatpush1.xpose.msra.mxu0 %v729
        %1014 = vmatprep.subr.mxu0 0.0
        %1015 = vmatpush1.xpose.msra.mxu0 %v732
        %1016 = vmatprep.subr.mxu0 0.0
        %1017 = vmatpush1.xpose.msra.mxu0 %v735
        %1018 = vmatprep.subr.mxu0 0.0
        %1019 = vmatpush1.xpose.msra.mxu0 %v738
        %1020 = vmatprep.subr.mxu0 0.0
        %1021 = vmatpush1.xpose.msra.mxu0 %v741
        %1022 = vmatprep.subr.mxu0 0.0
        %1023 = vmatpush1.xpose.msra.mxu0 %v744
        %1024 = vmatprep.subr.mxu0 0.0
        %1025 = vmatpush1.xpose.msra.mxu0 %v747
        %1026 = vmatprep.mubr.f32.mxu0 0.0
        %1027 = vmatmul.mubr.f32.gmra.mrb[0].mxu0 %v363
        %v1028 = vpop.f32.mrb[0].mxu0
        %v1029 = vadd.f32 0.0, %v1028
        %v1030 = vpop.f32.mrb[0].mxu0
        %v1031 = vadd.f32 0.0, %v1030
        %1032 = vdwg.mxu0
        %1033 = vst [vmem:[%s176] sm:$0xff] %v816
        %1034 = vst [vmem:[%s176 + $0x8] sm:$0xff] %v818
        %1035 = vst [vmem:[%s176 + $0x10] sm:$0xff] %v887
        %1036 = vst [vmem:[%s176 + $0x18] sm:$0xff] %v889
        %1037 = vst [vmem:[%s176 + $0x20] sm:$0xff] %v958
        %1038 = vst [vmem:[%s176 + $0x28] sm:$0xff] %v960
        %1039 = vst [vmem:[%s176 + $0x30] sm:$0xff] %v1029
        %1040 = vst [vmem:[%s176 + $0x38] sm:$0xff] %v1031
        %s1041 = sand.u32 %s92, 1
        %s1042 = scalar_lea.sflag [#allocation3], %s1041
        %s1043 = sand.u32 %s92, 1
        %s1044 = smul.addr %s1043, 64
        %s1045 = scalar_lea.vmem [#allocation2], %s1044
        // Predicated region
        $region29: #{tpu_custom_call.1} parent=27 // pred_check
          %p1046 = pneg %p102
        $region30: #{tpu_custom_call.1} parent=27 // pred_check_branch
          %1048 = sbr.rel (%p1046) target = $region32
        $region31: #{tpu_custom_call.1} parent=27 // pred_region
          %s1049 = smul.u32 8, %s21
          %s1051 = ssub.s32 1024, 1024
          %1052 = vsyncadd %s1042, %s1051
          %s1053 = smul.addr %s20, 16
          %s1054 = sadd.s32 %s1049, %s1053
          %s1055 = smul.addr %s1054, 128
          %s1056 = scalar_lea.hbm %s2, %s1055
          %s1058 = sshll.u32 %s1045, 4
          %s1059 = int_to_ptr.vmem [resolvable:$true] %s1058
          %1061 = dma.vmem_to_hbm [thread:$0]  %s1059, 1024, %s1056, %s1042
        $region32: #{tpu_custom_call.1} parent=27 // pred_fallthru
          _
      $region28: #{tpu_custom_call.1} parent=5 // pred_fallthru
        _
      %p1062 = scmp.le.s32.totalorder 2, %s11
      // Predicated region
      $region33: #{tpu_custom_call.1} parent=5 // pred_check
        %p1063 = pneg %p1062
      $region34: #{tpu_custom_call.1} parent=5 // pred_check_branch
        %1065 = sbr.rel (%p1063) target = $region36
      $region35: #{tpu_custom_call.1} parent=5 // pred_region
        %s1066 = ssub.s32 %s11, 2
        // Predicated region
        $region37: #{tpu_custom_call.1} parent=35 // pred_check
          %p1067 = pneg %p108
        $region38: #{tpu_custom_call.1} parent=35 // pred_check_branch
          %1069 = sbr.rel (%p1067) target = $region40
        $region39: #{tpu_custom_call.1} parent=35 // pred_region
          %s1070 = sand.u32 %s93, 1
          %s1071 = scalar_lea.sflag [#allocation3], %s1070
          %s1072 = sand.u32 %s93, 1
          %s1073 = smul.addr %s1072, 64
          %s1074 = scalar_lea.vmem [#allocation2], %s1073
          %1075 = dma.done %s1071, 1024
        $region40: #{tpu_custom_call.1} parent=35 // pred_fallthru
          _
      $region36: #{tpu_custom_call.1} parent=5 // pred_fallthru
        _
    $region6: #{tpu_custom_call.1} parent=1 // loop_footer
      %s15 = sadd.s32 1, %s11
    $region7: #{tpu_custom_call.1} parent=1 // loop_footer_branch
      %10 = sbr.rel target = $region3
    $region8: #{tpu_custom_call.1} parent=1 // loop_exit
      _
    %1076 = vsyncpa [#allocation3], 1
    %s1077 = scalar_lea.sflag [#allocation3], 1
    %1078 = vsyncpa %s1077, 1

</llo_original>
